<compile_context>
chip_gen: v5e
topology: v5e:2x2
jax: 0.10.0
libtpu: 0.0.40
codegen_flags: <defaults>
</compile_context>

<pallas_src>
import functools
import math

import jax
import jax.numpy as jnp
from jax.experimental import pallas as pl
from jax.experimental.pallas import tpu as pltpu

# ----------------------------- config ---------------------------------------
BATCH = 2
SEQ = 8
DIM = 64
N_HEADS = 4
N_KV_HEADS = 2
HEAD_DIM = DIM // N_HEADS          # 16
N_REP = N_HEADS // N_KV_HEADS      # 2
MULTIPLE_OF = 32
NORM_EPS = 1e-5
START_POS = 0
ROPE_THETA = 10000.0

_hd = int(2 * (4 * DIM) / 3)
HIDDEN = MULTIPLE_OF * ((_hd + MULTIPLE_OF - 1) // MULTIPLE_OF)   # 192

QD = N_HEADS * HEAD_DIM            # 64
KVD = N_KV_HEADS * HEAD_DIM        # 32
QKVD = QD + 2 * KVD                # 128  (lane-dense fused QKV output)


# ----------------------------- fused kernel ---------------------------------
def _encoder_block_kernel(
    x_ref,        # (SEQ, DIM)       f32  tokens of this batch
    normw_ref,    # (2, DIM)         f32  [attn_norm_w ; ffn_norm_w]
    rope_ref,     # (2, SEQ, QKVD)   f32  [cos_ext ; signed-sin_ext], V lanes = (1, 0)
    wqkv_ref,     # (DIM, QKVD)      bf16 [wq*scale | wk | wv]
    wo_ref,       # (QD, DIM)        bf16
    w13_ref,      # (DIM, 2*HIDDEN)  bf16 [w1 | w3]
    w2_ref,       # (HIDDEN, DIM)    bf16
    o_ref,        # (SEQ, DIM)       f32
    *, n_heads, n_kv_heads, head_dim, hidden, eps,
):
    n_rep = n_heads // n_kv_heads
    qd = n_heads * head_dim
    kvd = n_kv_heads * head_dim
    qkvd = qd + 2 * kvd

    x = x_ref[...].astype(jnp.float32)                          # (S, dim)

    # ---- RMSNorm (attention branch), f32 VPU math ----
    ms = jnp.mean(x * x, axis=-1, keepdims=True)
    xn = normw_ref[0:1, :] * (x * jax.lax.rsqrt(ms + eps))

    # ---- fused QKV projection: bf16 operands, f32 accumulate on the MXU ----
    qkv = jnp.dot(xn.astype(jnp.bfloat16), wqkv_ref[...],
                  preferred_element_type=jnp.float32)            # (S, 128)

    # ---- RoPE: full-width FMA; pair swap via XLU lane rolls + even/odd select.
    #      V lanes pass through untouched because cos=1 / sin=0 there. ----
    lane = jax.lax.broadcasted_iota(jnp.int32, qkv.shape, 1)
    swapped = jnp.where(lane % 2 == 0,
                        pltpu.roll(qkv, qkvd - 1, 1),            # lane j <- qkv[j+1]
                        pltpu.roll(qkv, 1, 1))                   # lane j <- qkv[j-1]
    roped = qkv * rope_ref[0] + swapped * rope_ref[1]            # (S, 128)

    # ---- attention (non-causal within this batch), static head unroll (GQA) ----
    attn_out = jnp.zeros_like(x)                                 # (S, dim) f32
    for h in range(n_heads):
        kh = h // n_rep
        q_h = roped[:, h * head_dim:(h + 1) * head_dim]                          # (S, hd)
        k_h = roped[:, qd + kh * head_dim: qd + (kh + 1) * head_dim]             # (S, hd)
        v_h = roped[:, qd + kvd + kh * head_dim: qd + kvd + (kh + 1) * head_dim]  # (S, hd)
        s = jax.lax.dot_general(q_h.astype(jnp.bfloat16), k_h.astype(jnp.bfloat16),
                                (((1,), (1,)), ((), ())),
                                preferred_element_type=jnp.float32)              # (S, S)
        m = jnp.max(s, axis=-1, keepdims=True)
        e = jnp.exp(s - m)                                        # f32, values in (0, 1]
        l = jnp.sum(e, axis=-1, keepdims=True)
        o_h = jnp.dot(e.astype(jnp.bfloat16), v_h.astype(jnp.bfloat16),
                      preferred_element_type=jnp.float32)         # (S, hd)
        o_h = o_h * pl.reciprocal(l, approx=True)                 # deferred softmax norm (EUP)
        # per-head wo accumulation: no lane-concatenate of sub-128 chunks
        attn_out = attn_out + jnp.dot(
            o_h.astype(jnp.bfloat16), wo_ref[h * head_dim:(h + 1) * head_dim, :],
            preferred_element_type=jnp.float32)

    h1 = x + attn_out                                             # residual (f32)

    # ---- RMSNorm (FFN branch) ----
    ms2 = jnp.mean(h1 * h1, axis=-1, keepdims=True)
    hn = normw_ref[1:2, :] * (h1 * jax.lax.rsqrt(ms2 + eps))

    # ---- SwiGLU FFN with fused w1|w3 ----
    u = jnp.dot(hn.astype(jnp.bfloat16), w13_ref[...],
                preferred_element_type=jnp.float32)               # (S, 2*hidden)
    a = u[:, :hidden]
    g = u[:, hidden:]
    ff = jnp.dot((a * jax.nn.sigmoid(a) * g).astype(jnp.bfloat16), w2_ref[...],
                 preferred_element_type=jnp.float32)

    o_ref[...] = (h1 + ff).astype(o_ref.dtype)


# --------------------------- RoPE precompute ---------------------------------
def rope_tables(seq_len, head_dim, start_pos, theta=ROPE_THETA):
    half = head_dim // 2
    inv_freq = 1.0 / (theta ** (jnp.arange(0, half, dtype=jnp.float32) * 2.0 / head_dim))
    t = jnp.arange(start_pos, start_pos + seq_len, dtype=jnp.float32)
    ang = jnp.outer(t, inv_freq)                                  # (S, hd/2)
    cos, sin = jnp.cos(ang), jnp.sin(ang)
    cos_full = jnp.repeat(cos, 2, axis=-1)                        # (S, hd)
    sin_full = jnp.repeat(sin, 2, axis=-1)
    sign = jnp.tile(jnp.array([-1.0, 1.0], jnp.float32), (half,))
    sin_signed = sin_full * sign[None, :]                         # -sin even, +sin odd
    return cos_full, sin_signed, cos, sin


def make_fused_params(params, seq, start_pos):
    """One-time preprocessing (depends only on weights, seq, start_pos).
    Call once and cache the result; the per-forward path is just the kernel."""
    scale = 1.0 / math.sqrt(HEAD_DIM)                 # score scale folded into wq
    wqkv_t = jnp.concatenate(
        [params["wq_t"] * scale, params["wk_t"], params["wv_t"]], axis=1)   # (DIM, 128)

    cos_full, sin_signed, _, _ = rope_tables(seq, HEAD_DIM, start_pos)
    # extend with a pass-through segment (cos=1, sin=0) over the V lanes so the
    # kernel applies RoPE as one full-128-lane FMA with no slicing.
    cos_ext = jnp.concatenate(
        [jnp.tile(cos_full, (1, N_HEADS + N_KV_HEADS)),
         jnp.ones((seq, KVD), jnp.float32)], axis=1)                        # (S, 128)
    sin_ext = jnp.concatenate(
        [jnp.tile(sin_signed, (1, N_HEADS + N_KV_HEADS)),
         jnp.zeros((seq, KVD), jnp.float32)], axis=1)                       # (S, 128)
    rope = jnp.stack([cos_ext, sin_ext], axis=0)                            # (2, S, 128)

    return {
        "norm_w": jnp.stack([params["attn_norm_w"], params["ffn_norm_w"]], 0),  # (2, DIM) f32
        "rope": rope,                                                           # f32
        "wqkv_t": wqkv_t.astype(jnp.bfloat16),
        "wo_t": params["wo_t"].astype(jnp.bfloat16),
        "w13_t": jnp.concatenate([params["w1_t"], params["w3_t"]], 1).astype(jnp.bfloat16),
        "w2_t": params["w2_t"].astype(jnp.bfloat16),
    }


# --------------------------- full EncoderBlock -------------------------------
@jax.jit
def encoder_block(x, fused):
    B, S, D = x.shape
    x2d = x.reshape(B * S, D)

    kernel = functools.partial(
        _encoder_block_kernel,
        n_heads=N_HEADS, n_kv_heads=N_KV_HEADS,
        head_dim=HEAD_DIM, hidden=HIDDEN, eps=NORM_EPS,
    )
    # Grid over batch: each step handles one batch's tokens (no cross-batch mask
    # needed); "parallel" lets v7x shard batches across its two TensorCores.
    # Weight index_maps are constant, so their tiles are not re-fetched per step.
    out2d = pl.pallas_call(
        kernel,
        out_shape=jax.ShapeDtypeStruct((B * S, D), x.dtype),
        grid=(B,),
        in_specs=[
            pl.BlockSpec((S, D), lambda b: (b, 0)),            # x (tokens of batch b)
            pl.BlockSpec((2, D), lambda b: (0, 0)),            # stacked norm weights
            pl.BlockSpec((2, S, QKVD), lambda b: (0, 0, 0)),   # stacked cos / signed-sin
            pl.BlockSpec((D, QKVD), lambda b: (0, 0)),         # wqkv (bf16)
            pl.BlockSpec((QD, D), lambda b: (0, 0)),           # wo   (bf16)
            pl.BlockSpec((D, 2 * HIDDEN), lambda b: (0, 0)),   # w1|w3 (bf16)
            pl.BlockSpec((HIDDEN, D), lambda b: (0, 0)),       # w2   (bf16)
        ],
        out_specs=pl.BlockSpec((S, D), lambda b: (b, 0)),
        compiler_params=pltpu.CompilerParams(
            dimension_semantics=("parallel",)),
    )(x2d, fused["norm_w"], fused["rope"], fused["wqkv_t"], fused["wo_t"],
      fused["w13_t"], fused["w2_t"])
    return out2d.reshape(B, S, D)


# --------------------------- pure-JAX reference ------------------------------
def _ref_rmsnorm(x, w, eps):
    ms = jnp.mean(x * x, axis=-1, keepdims=True)
    return w * (x * jax.lax.rsqrt(ms + eps))


def _ref_rope(x, cos, sin):  # x: (B, S, H, D); cos/sin: (S, D/2)
    x2 = x.reshape(*x.shape[:-1], -1, 2)
    xe, xo = x2[..., 0], x2[..., 1]
    c = cos[None, :, None, :]
    s = sin[None, :, None, :]
    re = xe * c - xo * s
    im = xe * s + xo * c
    return jnp.stack([re, im], axis=-1).reshape(x.shape)


def encoder_block_ref(x, params, start_pos):
    B, S, D = x.shape
    xn = _ref_rmsnorm(x, params["attn_norm_w"], NORM_EPS)
    q = (xn @ params["wq_t"]).reshape(B, S, N_HEADS, HEAD_DIM)
    k = (xn @ params["wk_t"]).reshape(B, S, N_KV_HEADS, HEAD_DIM)
    v = (xn @ params["wv_t"]).reshape(B, S, N_KV_HEADS, HEAD_DIM)
    _, _, cos, sin = rope_tables(S, HEAD_DIM, start_pos)
    q = _ref_rope(q, cos, sin)
    k = _ref_rope(k, cos, sin)
    k = jnp.repeat(k, N_REP, axis=2)
    v = jnp.repeat(v, N_REP, axis=2)
    q, k, v = (t.transpose(0, 2, 1, 3) for t in (q, k, v))
    scores = jnp.einsum("bhqd,bhkd->bhqk", q, k) / math.sqrt(HEAD_DIM)
    p = jax.nn.softmax(scores, axis=-1)
    o = jnp.einsum("bhqk,bhkd->bhqd", p, v)
    o = o.transpose(0, 2, 1, 3).reshape(B, S, N_HEADS * HEAD_DIM)
    h = x + o @ params["wo_t"]
    hn = _ref_rmsnorm(h, params["ffn_norm_w"], NORM_EPS)
    a = hn @ params["w1_t"]
    ff = (a * jax.nn.sigmoid(a) * (hn @ params["w3_t"])) @ params["w2_t"]
    return h + ff


# ------------------------------- main ----------------------------------------
if __name__ == "__main__":
    key = jax.random.PRNGKey(0)
    ks = jax.random.split(key, 8)

    def init(k, shape):
        return (jax.random.normal(k, shape, jnp.float32) * 0.02).astype(jnp.float32)

    # nn.Linear weights are (out, in); we store transposed (in, out).
    params = {
        "attn_norm_w": jnp.ones((DIM,), jnp.float32),
        "ffn_norm_w": jnp.ones((DIM,), jnp.float32),
        "wq_t": init(ks[0], (DIM, N_HEADS * HEAD_DIM)),
        "wk_t": init(ks[1], (DIM, N_KV_HEADS * HEAD_DIM)),
        "wv_t": init(ks[2], (DIM, N_KV_HEADS * HEAD_DIM)),
        "wo_t": init(ks[3], (N_HEADS * HEAD_DIM, DIM)),
        "w1_t": init(ks[4], (DIM, HIDDEN)),
        "w3_t": init(ks[5], (DIM, HIDDEN)),
        "w2_t": init(ks[6], (HIDDEN, DIM)),
    }
    x = jax.random.normal(ks[7], (BATCH, SEQ, DIM), jnp.float32)

    # Preprocessing hoisted out of the forward path: built ONCE, reused per call.
    fused = jax.tree_util.tree_map(jax.block_until_ready,
                                   make_fused_params(params, SEQ, START_POS))

    out = jax.block_until_ready(encoder_block(x, fused))
    ref = jax.block_until_ready(encoder_block_ref(x, params, START_POS))

    assert out.shape == (BATCH, SEQ, DIM)
    # bf16 operands at the dots + approx reciprocal -> loosened tolerance.
    assert jnp.allclose(out, ref, rtol=2e-2, atol=2e-2), (
        f"max abs err {jnp.max(jnp.abs(out - ref))}"
    )
    print("KERNEL_OK")
</pallas_src>

<mosaic_0001>
module attributes {stable_mosaic.version = 11 : i64} {
  func.func @_encoder_block_kernel(%arg0: i32, %arg1: memref<8x64xf32, #tpu.memory_space<vmem>>, %arg2: memref<2x64xf32, #tpu.memory_space<vmem>>, %arg3: memref<2x8x128xf32, #tpu.memory_space<vmem>>, %arg4: memref<64x128xbf16, #tpu.memory_space<vmem>>, %arg5: memref<64x64xbf16, #tpu.memory_space<vmem>>, %arg6: memref<64x384xbf16, #tpu.memory_space<vmem>>, %arg7: memref<192x64xbf16, #tpu.memory_space<vmem>>, %arg8: memref<8x64xf32, #tpu.memory_space<vmem>>) attributes {dimension_semantics = [#tpu.dimension_semantics<parallel>], iteration_bounds = array<i64: 2>, scalar_prefetch = 0 : i64, scratch_operands = 0 : i64, tpu.core_type = #tpu.core_type<tc>, window_params = [{transform_indices = @transform_0, window_bounds = array<i64: 8, 64>}, {pipeline_mode = #tpu.pipeline_mode<synchronous>, transform_indices = @transform_1, window_bounds = array<i64: 2, 64>}, {pipeline_mode = #tpu.pipeline_mode<synchronous>, transform_indices = @transform_2, window_bounds = array<i64: 2, 8, 128>}, {pipeline_mode = #tpu.pipeline_mode<synchronous>, transform_indices = @transform_3, window_bounds = array<i64: 64, 128>}, {pipeline_mode = #tpu.pipeline_mode<synchronous>, transform_indices = @transform_4, window_bounds = array<i64: 64, 64>}, {pipeline_mode = #tpu.pipeline_mode<synchronous>, transform_indices = @transform_5, window_bounds = array<i64: 64, 384>}, {pipeline_mode = #tpu.pipeline_mode<synchronous>, transform_indices = @transform_6, window_bounds = array<i64: 192, 64>}, {transform_indices = @transform_7, window_bounds = array<i64: 8, 64>}]} {
    %c0 = arith.constant 0 : index
    %c0_0 = arith.constant 0 : index
    %0 = vector.load %arg1[%c0, %c0_0] : memref<8x64xf32, #tpu.memory_space<vmem>>, vector<8x64xf32>
    %1 = arith.mulf %0, %0 : vector<8x64xf32>
    %cst = arith.constant dense<0.000000e+00> : vector<8xf32>
    %2 = vector.multi_reduction <add>, %1, %cst [1] : vector<8x64xf32> to vector<8xf32>
    %3 = vector.shape_cast %2 : vector<8xf32> to vector<8x1xf32>
    %cst_1 = arith.constant 6.400000e+01 : f32
    %4 = vector.broadcast %cst_1 : f32 to vector<8x1xf32>
    %5 = arith.divf %3, %4 : vector<8x1xf32>
    %c0_2 = arith.constant 0 : index
    %c0_3 = arith.constant 0 : index
    %6 = vector.load %arg2[%c0_2, %c0_3] : memref<2x64xf32, #tpu.memory_space<vmem>>, vector<1x64xf32>
    %cst_4 = arith.constant 9.99999974E-6 : f32
    %7 = vector.broadcast %cst_4 : f32 to vector<8x1xf32>
    %8 = arith.addf %5, %7 : vector<8x1xf32>
    %9 = math.rsqrt %8 : vector<8x1xf32>
    %10 = vector.broadcast %9 : vector<8x1xf32> to vector<8x64xf32>
    %11 = arith.mulf %0, %10 : vector<8x64xf32>
    %12 = vector.broadcast %6 : vector<1x64xf32> to vector<8x64xf32>
    %13 = arith.mulf %12, %11 : vector<8x64xf32>
    %14 = arith.truncf %13 : vector<8x64xf32> to vector<8x64xbf16>
    %c0_5 = arith.constant 0 : index
    %c0_6 = arith.constant 0 : index
    %15 = vector.load %arg4[%c0_5, %c0_6] : memref<64x128xbf16, #tpu.memory_space<vmem>>, vector<64x128xbf16>
    %cst_7 = arith.constant dense<0.000000e+00> : vector<8x128xf32>
    %16 = tpu.matmul %14, %15, %cst_7 {dimension_numbers = #tpu.dot_dimension_numbers<[1], [0], [0], [1], [0, 0, 1, 1], [], []>} : vector<8x64xbf16>, vector<64x128xbf16>, vector<8x128xf32> -> vector<8x128xf32>
    %17 = tpu.iota {dimensions = array<i32: 1>} : vector<8x128xi32>
    %c2_i32 = arith.constant 2 : i32
    %c0_i32 = arith.constant 0 : i32
    %18 = arith.cmpi eq, %c2_i32, %c0_i32 : i32
    %c1_i32 = arith.constant 1 : i32
    %19 = arith.select %18, %c1_i32, %c2_i32 : i32
    %20 = vector.broadcast %19 : i32 to vector<8x128xi32>
    %21 = arith.remsi %17, %20 : vector<8x128xi32>
    %c0_i32_8 = arith.constant 0 : i32
    %22 = vector.broadcast %c0_i32_8 : i32 to vector<8x128xi32>
    %23 = arith.cmpi ne, %21, %22 : vector<8x128xi32>
    %c0_i32_9 = arith.constant 0 : i32
    %24 = vector.broadcast %c0_i32_9 : i32 to vector<8x128xi32>
    %25 = arith.cmpi slt, %21, %24 : vector<8x128xi32>
    %c0_i32_10 = arith.constant 0 : i32
    %26 = arith.cmpi slt, %19, %c0_i32_10 : i32
    %27 = vector.broadcast %26 : i1 to vector<8x128xi1>
    %28 = vector.broadcast %27 : vector<8x128xi1> to vector<8x128xi1>
    %29 = arith.xori %25, %28 : vector<8x128xi1>
    %30 = arith.andi %29, %23 : vector<8x128xi1>
    %31 = vector.broadcast %19 : i32 to vector<8x128xi32>
    %32 = arith.addi %21, %31 : vector<8x128xi32>
    %33 = arith.select %30, %32, %21 : vector<8x128xi1>, vector<8x128xi32>
    %c0_i32_11 = arith.constant 0 : i32
    %34 = vector.broadcast %c0_i32_11 : i32 to vector<8x128xi32>
    %35 = arith.cmpi eq, %33, %34 : vector<8x128xi32>
    %c127_i32 = arith.constant 127 : i32
    %36 = tpu.dynamic_rotate %16 by %c127_i32 dim 1 : vector<8x128xf32>, i32 -> vector<8x128xf32>
    %c1_i32_12 = arith.constant 1 : i32
    %37 = tpu.dynamic_rotate %16 by %c1_i32_12 dim 1 : vector<8x128xf32>, i32 -> vector<8x128xf32>
    %38 = arith.select %35, %36, %37 : vector<8x128xi1>, vector<8x128xf32>
    %c0_13 = arith.constant 0 : index
    %c0_14 = arith.constant 0 : index
    %c0_15 = arith.constant 0 : index
    %39 = vector.load %arg3[%c0_13, %c0_14, %c0_15] : memref<2x8x128xf32, #tpu.memory_space<vmem>>, vector<1x8x128xf32>
    %40 = vector.shape_cast %39 : vector<1x8x128xf32> to vector<8x128xf32>
    %41 = arith.mulf %16, %40 : vector<8x128xf32>
    %c1 = arith.constant 1 : index
    %c0_16 = arith.constant 0 : index
    %c0_17 = arith.constant 0 : index
    %42 = vector.load %arg3[%c1, %c0_16, %c0_17] : memref<2x8x128xf32, #tpu.memory_space<vmem>>, vector<1x8x128xf32>
    %43 = vector.shape_cast %42 : vector<1x8x128xf32> to vector<8x128xf32>
    %44 = arith.mulf %38, %43 : vector<8x128xf32>
    %45 = arith.addf %41, %44 : vector<8x128xf32>
    %cst_18 = arith.constant 0.000000e+00 : f32
    %46 = vector.broadcast %cst_18 : f32 to vector<8x64xf32>
    %47 = vector.extract_strided_slice %45 {offsets = [0, 0], sizes = [8, 16], strides = [1, 1]} : vector<8x128xf32> to vector<8x16xf32>
    %48 = vector.extract_strided_slice %45 {offsets = [0, 64], sizes = [8, 16], strides = [1, 1]} : vector<8x128xf32> to vector<8x16xf32>
    %49 = vector.extract_strided_slice %45 {offsets = [0, 96], sizes = [8, 16], strides = [1, 1]} : vector<8x128xf32> to vector<8x16xf32>
    %50 = arith.truncf %47 : vector<8x16xf32> to vector<8x16xbf16>
    %51 = arith.truncf %48 : vector<8x16xf32> to vector<8x16xbf16>
    %cst_19 = arith.constant dense<0.000000e+00> : vector<8x8xf32>
    %52 = tpu.matmul %50, %51, %cst_19 {dimension_numbers = #tpu.dot_dimension_numbers<[1], [1], [0], [0], [0, 0, 1, 0], [], []>} : vector<8x16xbf16>, vector<8x16xbf16>, vector<8x8xf32> -> vector<8x8xf32>
    %cst_20 = arith.constant dense<0xFF800000> : vector<8xf32>
    %53 = vector.multi_reduction <maximumf>, %52, %cst_20 [1] : vector<8x8xf32> to vector<8xf32>
    %54 = vector.shape_cast %53 : vector<8xf32> to vector<8x1xf32>
    %55 = vector.broadcast %54 : vector<8x1xf32> to vector<8x8xf32>
    %56 = arith.subf %52, %55 : vector<8x8xf32>
    %57 = math.exp %56 : vector<8x8xf32>
    %cst_21 = arith.constant dense<0.000000e+00> : vector<8xf32>
    %58 = vector.multi_reduction <add>, %57, %cst_21 [1] : vector<8x8xf32> to vector<8xf32>
    %59 = vector.shape_cast %58 : vector<8xf32> to vector<8x1xf32>
    %60 = arith.truncf %57 : vector<8x8xf32> to vector<8x8xbf16>
    %61 = arith.truncf %49 : vector<8x16xf32> to vector<8x16xbf16>
    %cst_22 = arith.constant dense<0.000000e+00> : vector<8x16xf32>
    %62 = tpu.matmul %60, %61, %cst_22 {dimension_numbers = #tpu.dot_dimension_numbers<[1], [0], [0], [1], [0, 0, 1, 1], [], []>} : vector<8x8xbf16>, vector<8x16xbf16>, vector<8x16xf32> -> vector<8x16xf32>
    %63 = tpu.reciprocal %59 {approx = true} : vector<8x1xf32> -> vector<8x1xf32>
    %64 = vector.broadcast %63 : vector<8x1xf32> to vector<8x16xf32>
    %65 = arith.mulf %62, %64 : vector<8x16xf32>
    %66 = arith.truncf %65 : vector<8x16xf32> to vector<8x16xbf16>
    %c0_23 = arith.constant 0 : index
    %c0_24 = arith.constant 0 : index
    %67 = vector.load %arg5[%c0_23, %c0_24] : memref<64x64xbf16, #tpu.memory_space<vmem>>, vector<16x64xbf16>
    %cst_25 = arith.constant dense<0.000000e+00> : vector<8x64xf32>
    %68 = tpu.matmul %66, %67, %cst_25 {dimension_numbers = #tpu.dot_dimension_numbers<[1], [0], [0], [1], [0, 0, 1, 1], [], []>} : vector<8x16xbf16>, vector<16x64xbf16>, vector<8x64xf32> -> vector<8x64xf32>
    %69 = arith.addf %46, %68 : vector<8x64xf32>
    %70 = vector.extract_strided_slice %45 {offsets = [0, 16], sizes = [8, 16], strides = [1, 1]} : vector<8x128xf32> to vector<8x16xf32>
    %71 = vector.extract_strided_slice %45 {offsets = [0, 64], sizes = [8, 16], strides = [1, 1]} : vector<8x128xf32> to vector<8x16xf32>
    %72 = vector.extract_strided_slice %45 {offsets = [0, 96], sizes = [8, 16], strides = [1, 1]} : vector<8x128xf32> to vector<8x16xf32>
    %73 = arith.truncf %70 : vector<8x16xf32> to vector<8x16xbf16>
    %74 = arith.truncf %71 : vector<8x16xf32> to vector<8x16xbf16>
    %cst_26 = arith.constant dense<0.000000e+00> : vector<8x8xf32>
    %75 = tpu.matmul %73, %74, %cst_26 {dimension_numbers = #tpu.dot_dimension_numbers<[1], [1], [0], [0], [0, 0, 1, 0], [], []>} : vector<8x16xbf16>, vector<8x16xbf16>, vector<8x8xf32> -> vector<8x8xf32>
    %cst_27 = arith.constant dense<0xFF800000> : vector<8xf32>
    %76 = vector.multi_reduction <maximumf>, %75, %cst_27 [1] : vector<8x8xf32> to vector<8xf32>
    %77 = vector.shape_cast %76 : vector<8xf32> to vector<8x1xf32>
    %78 = vector.broadcast %77 : vector<8x1xf32> to vector<8x8xf32>
    %79 = arith.subf %75, %78 : vector<8x8xf32>
    %80 = math.exp %79 : vector<8x8xf32>
    %cst_28 = arith.constant dense<0.000000e+00> : vector<8xf32>
    %81 = vector.multi_reduction <add>, %80, %cst_28 [1] : vector<8x8xf32> to vector<8xf32>
    %82 = vector.shape_cast %81 : vector<8xf32> to vector<8x1xf32>
    %83 = arith.truncf %80 : vector<8x8xf32> to vector<8x8xbf16>
    %84 = arith.truncf %72 : vector<8x16xf32> to vector<8x16xbf16>
    %cst_29 = arith.constant dense<0.000000e+00> : vector<8x16xf32>
    %85 = tpu.matmul %83, %84, %cst_29 {dimension_numbers = #tpu.dot_dimension_numbers<[1], [0], [0], [1], [0, 0, 1, 1], [], []>} : vector<8x8xbf16>, vector<8x16xbf16>, vector<8x16xf32> -> vector<8x16xf32>
    %86 = tpu.reciprocal %82 {approx = true} : vector<8x1xf32> -> vector<8x1xf32>
    %87 = vector.broadcast %86 : vector<8x1xf32> to vector<8x16xf32>
    %88 = arith.mulf %85, %87 : vector<8x16xf32>
    %89 = arith.truncf %88 : vector<8x16xf32> to vector<8x16xbf16>
    %c16 = arith.constant 16 : index
    %c0_30 = arith.constant 0 : index
    %90 = vector.load %arg5[%c16, %c0_30] : memref<64x64xbf16, #tpu.memory_space<vmem>>, vector<16x64xbf16>
    %cst_31 = arith.constant dense<0.000000e+00> : vector<8x64xf32>
    %91 = tpu.matmul %89, %90, %cst_31 {dimension_numbers = #tpu.dot_dimension_numbers<[1], [0], [0], [1], [0, 0, 1, 1], [], []>} : vector<8x16xbf16>, vector<16x64xbf16>, vector<8x64xf32> -> vector<8x64xf32>
    %92 = arith.addf %69, %91 : vector<8x64xf32>
    %93 = vector.extract_strided_slice %45 {offsets = [0, 32], sizes = [8, 16], strides = [1, 1]} : vector<8x128xf32> to vector<8x16xf32>
    %94 = vector.extract_strided_slice %45 {offsets = [0, 80], sizes = [8, 16], strides = [1, 1]} : vector<8x128xf32> to vector<8x16xf32>
    %95 = vector.extract_strided_slice %45 {offsets = [0, 112], sizes = [8, 16], strides = [1, 1]} : vector<8x128xf32> to vector<8x16xf32>
    %96 = arith.truncf %93 : vector<8x16xf32> to vector<8x16xbf16>
    %97 = arith.truncf %94 : vector<8x16xf32> to vector<8x16xbf16>
    %cst_32 = arith.constant dense<0.000000e+00> : vector<8x8xf32>
    %98 = tpu.matmul %96, %97, %cst_32 {dimension_numbers = #tpu.dot_dimension_numbers<[1], [1], [0], [0], [0, 0, 1, 0], [], []>} : vector<8x16xbf16>, vector<8x16xbf16>, vector<8x8xf32> -> vector<8x8xf32>
    %cst_33 = arith.constant dense<0xFF800000> : vector<8xf32>
    %99 = vector.multi_reduction <maximumf>, %98, %cst_33 [1] : vector<8x8xf32> to vector<8xf32>
    %100 = vector.shape_cast %99 : vector<8xf32> to vector<8x1xf32>
    %101 = vector.broadcast %100 : vector<8x1xf32> to vector<8x8xf32>
    %102 = arith.subf %98, %101 : vector<8x8xf32>
    %103 = math.exp %102 : vector<8x8xf32>
    %cst_34 = arith.constant dense<0.000000e+00> : vector<8xf32>
    %104 = vector.multi_reduction <add>, %103, %cst_34 [1] : vector<8x8xf32> to vector<8xf32>
    %105 = vector.shape_cast %104 : vector<8xf32> to vector<8x1xf32>
    %106 = arith.truncf %103 : vector<8x8xf32> to vector<8x8xbf16>
    %107 = arith.truncf %95 : vector<8x16xf32> to vector<8x16xbf16>
    %cst_35 = arith.constant dense<0.000000e+00> : vector<8x16xf32>
    %108 = tpu.matmul %106, %107, %cst_35 {dimension_numbers = #tpu.dot_dimension_numbers<[1], [0], [0], [1], [0, 0, 1, 1], [], []>} : vector<8x8xbf16>, vector<8x16xbf16>, vector<8x16xf32> -> vector<8x16xf32>
    %109 = tpu.reciprocal %105 {approx = true} : vector<8x1xf32> -> vector<8x1xf32>
    %110 = vector.broadcast %109 : vector<8x1xf32> to vector<8x16xf32>
    %111 = arith.mulf %108, %110 : vector<8x16xf32>
    %112 = arith.truncf %111 : vector<8x16xf32> to vector<8x16xbf16>
    %c32 = arith.constant 32 : index
    %c0_36 = arith.constant 0 : index
    %113 = vector.load %arg5[%c32, %c0_36] : memref<64x64xbf16, #tpu.memory_space<vmem>>, vector<16x64xbf16>
    %cst_37 = arith.constant dense<0.000000e+00> : vector<8x64xf32>
    %114 = tpu.matmul %112, %113, %cst_37 {dimension_numbers = #tpu.dot_dimension_numbers<[1], [0], [0], [1], [0, 0, 1, 1], [], []>} : vector<8x16xbf16>, vector<16x64xbf16>, vector<8x64xf32> -> vector<8x64xf32>
    %115 = arith.addf %92, %114 : vector<8x64xf32>
    %116 = vector.extract_strided_slice %45 {offsets = [0, 48], sizes = [8, 16], strides = [1, 1]} : vector<8x128xf32> to vector<8x16xf32>
    %117 = vector.extract_strided_slice %45 {offsets = [0, 80], sizes = [8, 16], strides = [1, 1]} : vector<8x128xf32> to vector<8x16xf32>
    %118 = vector.extract_strided_slice %45 {offsets = [0, 112], sizes = [8, 16], strides = [1, 1]} : vector<8x128xf32> to vector<8x16xf32>
    %119 = arith.truncf %116 : vector<8x16xf32> to vector<8x16xbf16>
    %120 = arith.truncf %117 : vector<8x16xf32> to vector<8x16xbf16>
    %cst_38 = arith.constant dense<0.000000e+00> : vector<8x8xf32>
    %121 = tpu.matmul %119, %120, %cst_38 {dimension_numbers = #tpu.dot_dimension_numbers<[1], [1], [0], [0], [0, 0, 1, 0], [], []>} : vector<8x16xbf16>, vector<8x16xbf16>, vector<8x8xf32> -> vector<8x8xf32>
    %cst_39 = arith.constant dense<0xFF800000> : vector<8xf32>
    %122 = vector.multi_reduction <maximumf>, %121, %cst_39 [1] : vector<8x8xf32> to vector<8xf32>
    %123 = vector.shape_cast %122 : vector<8xf32> to vector<8x1xf32>
    %124 = vector.broadcast %123 : vector<8x1xf32> to vector<8x8xf32>
    %125 = arith.subf %121, %124 : vector<8x8xf32>
    %126 = math.exp %125 : vector<8x8xf32>
    %cst_40 = arith.constant dense<0.000000e+00> : vector<8xf32>
    %127 = vector.multi_reduction <add>, %126, %cst_40 [1] : vector<8x8xf32> to vector<8xf32>
    %128 = vector.shape_cast %127 : vector<8xf32> to vector<8x1xf32>
    %129 = arith.truncf %126 : vector<8x8xf32> to vector<8x8xbf16>
    %130 = arith.truncf %118 : vector<8x16xf32> to vector<8x16xbf16>
    %cst_41 = arith.constant dense<0.000000e+00> : vector<8x16xf32>
    %131 = tpu.matmul %129, %130, %cst_41 {dimension_numbers = #tpu.dot_dimension_numbers<[1], [0], [0], [1], [0, 0, 1, 1], [], []>} : vector<8x8xbf16>, vector<8x16xbf16>, vector<8x16xf32> -> vector<8x16xf32>
    %132 = tpu.reciprocal %128 {approx = true} : vector<8x1xf32> -> vector<8x1xf32>
    %133 = vector.broadcast %132 : vector<8x1xf32> to vector<8x16xf32>
    %134 = arith.mulf %131, %133 : vector<8x16xf32>
    %135 = arith.truncf %134 : vector<8x16xf32> to vector<8x16xbf16>
    %c48 = arith.constant 48 : index
    %c0_42 = arith.constant 0 : index
    %136 = vector.load %arg5[%c48, %c0_42] : memref<64x64xbf16, #tpu.memory_space<vmem>>, vector<16x64xbf16>
    %cst_43 = arith.constant dense<0.000000e+00> : vector<8x64xf32>
    %137 = tpu.matmul %135, %136, %cst_43 {dimension_numbers = #tpu.dot_dimension_numbers<[1], [0], [0], [1], [0, 0, 1, 1], [], []>} : vector<8x16xbf16>, vector<16x64xbf16>, vector<8x64xf32> -> vector<8x64xf32>
    %138 = arith.addf %115, %137 : vector<8x64xf32>
    %139 = arith.addf %0, %138 : vector<8x64xf32>
    %140 = arith.mulf %139, %139 : vector<8x64xf32>
    %cst_44 = arith.constant dense<0.000000e+00> : vector<8xf32>
    %141 = vector.multi_reduction <add>, %140, %cst_44 [1] : vector<8x64xf32> to vector<8xf32>
    %142 = vector.shape_cast %141 : vector<8xf32> to vector<8x1xf32>
    %cst_45 = arith.constant 6.400000e+01 : f32
    %143 = vector.broadcast %cst_45 : f32 to vector<8x1xf32>
    %144 = arith.divf %142, %143 : vector<8x1xf32>
    %c1_46 = arith.constant 1 : index
    %c0_47 = arith.constant 0 : index
    %145 = vector.load %arg2[%c1_46, %c0_47] : memref<2x64xf32, #tpu.memory_space<vmem>>, vector<1x64xf32>
    %cst_48 = arith.constant 9.99999974E-6 : f32
    %146 = vector.broadcast %cst_48 : f32 to vector<8x1xf32>
    %147 = arith.addf %144, %146 : vector<8x1xf32>
    %148 = math.rsqrt %147 : vector<8x1xf32>
    %149 = vector.broadcast %148 : vector<8x1xf32> to vector<8x64xf32>
    %150 = arith.mulf %139, %149 : vector<8x64xf32>
    %151 = vector.broadcast %145 : vector<1x64xf32> to vector<8x64xf32>
    %152 = arith.mulf %151, %150 : vector<8x64xf32>
    %153 = arith.truncf %152 : vector<8x64xf32> to vector<8x64xbf16>
    %c0_49 = arith.constant 0 : index
    %c0_50 = arith.constant 0 : index
    %154 = vector.load %arg6[%c0_49, %c0_50] : memref<64x384xbf16, #tpu.memory_space<vmem>>, vector<64x384xbf16>
    %cst_51 = arith.constant dense<0.000000e+00> : vector<8x384xf32>
    %155 = tpu.matmul %153, %154, %cst_51 {dimension_numbers = #tpu.dot_dimension_numbers<[1], [0], [0], [1], [0, 0, 1, 1], [], []>} : vector<8x64xbf16>, vector<64x384xbf16>, vector<8x384xf32> -> vector<8x384xf32>
    %156 = vector.extract_strided_slice %155 {offsets = [0, 0], sizes = [8, 192], strides = [1, 1]} : vector<8x384xf32> to vector<8x192xf32>
    %157 = vector.extract_strided_slice %155 {offsets = [0, 192], sizes = [8, 192], strides = [1, 1]} : vector<8x384xf32> to vector<8x192xf32>
    %158 = arith.negf %156 : vector<8x192xf32>
    %159 = math.exp %158 : vector<8x192xf32>
    %cst_52 = arith.constant 1.000000e+00 : f32
    %160 = vector.broadcast %cst_52 : f32 to vector<8x192xf32>
    %161 = arith.addf %160, %159 : vector<8x192xf32>
    %162 = arith.divf %160, %161 : vector<8x192xf32>
    %163 = arith.mulf %156, %162 : vector<8x192xf32>
    %164 = arith.mulf %163, %157 : vector<8x192xf32>
    %165 = arith.truncf %164 : vector<8x192xf32> to vector<8x192xbf16>
    %c0_53 = arith.constant 0 : index
    %c0_54 = arith.constant 0 : index
    %166 = vector.load %arg7[%c0_53, %c0_54] : memref<192x64xbf16, #tpu.memory_space<vmem>>, vector<192x64xbf16>
    %cst_55 = arith.constant dense<0.000000e+00> : vector<8x64xf32>
    %167 = tpu.matmul %165, %166, %cst_55 {dimension_numbers = #tpu.dot_dimension_numbers<[1], [0], [0], [1], [0, 0, 1, 1], [], []>} : vector<8x192xbf16>, vector<192x64xbf16>, vector<8x64xf32> -> vector<8x64xf32>
    %168 = arith.addf %139, %167 : vector<8x64xf32>
    %c0_56 = arith.constant 0 : index
    %c0_57 = arith.constant 0 : index
    %169 = vector.load %arg8[%c0_56, %c0_57] : memref<8x64xf32, #tpu.memory_space<vmem>>, vector<8x64xf32>
    tpu.vector_store %arg8[%c0_56, %c0_57], %168 {strides = array<i32>} : memref<8x64xf32, #tpu.memory_space<vmem>>, vector<8x64xf32>,
    return
  }
  func.func @transform_0(%arg0: i32) -> (i32, i32) {
    %c0_i32 = arith.constant 0 : i32
    %c0_i32_0 = arith.constant 0 : i32
    return %arg0, %c0_i32 : i32, i32
  }
  func.func @transform_1(%arg0: i32) -> (i32, i32) {
    %c0_i32 = arith.constant 0 : i32
    %c0_i32_0 = arith.constant 0 : i32
    %c0_i32_1 = arith.constant 0 : i32
    return %c0_i32, %c0_i32_0 : i32, i32
  }
  func.func @transform_2(%arg0: i32) -> (i32, i32, i32) {
    %c0_i32 = arith.constant 0 : i32
    %c0_i32_0 = arith.constant 0 : i32
    %c0_i32_1 = arith.constant 0 : i32
    %c0_i32_2 = arith.constant 0 : i32
    return %c0_i32, %c0_i32_0, %c0_i32_1 : i32, i32, i32
  }
  func.func @transform_3(%arg0: i32) -> (i32, i32) {
    %c0_i32 = arith.constant 0 : i32
    %c0_i32_0 = arith.constant 0 : i32
    %c0_i32_1 = arith.constant 0 : i32
    return %c0_i32, %c0_i32_0 : i32, i32
  }
  func.func @transform_4(%arg0: i32) -> (i32, i32) {
    %c0_i32 = arith.constant 0 : i32
    %c0_i32_0 = arith.constant 0 : i32
    %c0_i32_1 = arith.constant 0 : i32
    return %c0_i32, %c0_i32_0 : i32, i32
  }
  func.func @transform_5(%arg0: i32) -> (i32, i32) {
    %c0_i32 = arith.constant 0 : i32
    %c0_i32_0 = arith.constant 0 : i32
    %c0_i32_1 = arith.constant 0 : i32
    return %c0_i32, %c0_i32_0 : i32, i32
  }
  func.func @transform_6(%arg0: i32) -> (i32, i32) {
    %c0_i32 = arith.constant 0 : i32
    %c0_i32_0 = arith.constant 0 : i32
    %c0_i32_1 = arith.constant 0 : i32
    return %c0_i32, %c0_i32_0 : i32, i32
  }
  func.func @transform_7(%arg0: i32) -> (i32, i32) {
    %c0_i32 = arith.constant 0 : i32
    %c0_i32_0 = arith.constant 0 : i32
    return %arg0, %c0_i32 : i32, i32
  }
}

</mosaic_0001>

<llo_original>
// kernel: encoder_block.1
$region0: #{encoder_block.1}
  #allocation0 [shape = 'u32[]', space=smem, size = 0x4, offset = 0x4, fixed_abs, tag = 'smem constant byte address 0x4 - core index']
  #allocation1 [shape = 'u32[72,128]{1,0:T(1,128)}', space=vmem, size = 0x9000, scoped, tag = 'internal scratch']
  %s0 = inlined_call_operand.hbm [shape: f32[16,64], index: 0, kind: input, shape index: {}]
  %s1 = inlined_call_operand.vmem [shape: f32[2,64], index: 1, kind: input, shape index: {}]
  %s2 = inlined_call_operand.hbm [shape: f32[2,8,128], index: 2, kind: input, shape index: {}]
  %s3 = inlined_call_operand.vmem [shape: bf16[64,128], index: 3, kind: input, shape index: {}]
  %s4 = inlined_call_operand.vmem [shape: bf16[64,64], index: 4, kind: input, shape index: {}]
  %s5 = inlined_call_operand.vmem [shape: bf16[64,384], index: 5, kind: input, shape index: {}]
  %s6 = inlined_call_operand.vmem [shape: bf16[192,64], index: 6, kind: input, shape index: {}]
  %s7 = inlined_call_operand.hbm [shape: f32[16,64], index: 7, kind: output, shape index: {}]
  %s8 = sld [smem:[#allocation0]]
  $region69: #{encoder_block.1} parent=0
    _
  %s10 = ssub.s32 1, %s8
  %s11 = scalar_select 0, %s10, %s8
  $region1: #{encoder_block.1} parent=0
    #allocation2 [shape = 'u8[8192]{0}', space=vmem, size = 0x2000, scoped, tag = 'input window, operand 0']
    #allocation3 [shape = 's32[2]{0}', space=sflag, size = 0x8, scoped, tag = 'scoped memory for encoder_block.1']
    #allocation4 [shape = 's32[2]{0}', space=sflag, size = 0x8, scoped, tag = 'scoped memory for encoder_block.1']
    #allocation5 [shape = 'u8[8192]{0}', space=vmem, size = 0x2000, scoped, tag = 'input window, operand 2, single buffered']
    #allocation6 [shape = 's32[1]{0}', space=sflag, size = 0x4, scoped, tag = 'scoped memory for encoder_block.1']
    #allocation7 [shape = 'u8[8192]{0}', space=vmem, size = 0x2000, scoped, tag = 'output window, operand 0']
    %12 = vsyncpa [#allocation3], 0
    %s13 = scalar_lea.sflag [#allocation3], 1
    %14 = vsyncpa %s13, 0
    %15 = vsyncpa [#allocation6], 0
    %16 = vsyncpa [#allocation4], 0
    %s17 = scalar_lea.sflag [#allocation4], 1
    %18 = vsyncpa %s17, 0
    loop: start=0, step=1, limit=4
    $region2: #{encoder_block.1} parent=1 // loop_pre_header
      _
    $region3: #{encoder_block.1} parent=1 // loop_header
      %s20 = sphi 0, %s24
      %p21 = scmp.ge.s32.totalorder %s20, 4
      %s30 = sphi 0, %s32
      %s33 = sphi 0, %s30
      %s34 = sphi 0, %s33
      %s50 = sphi 0, %s34
      %s54 = sphi 0, %s54
      %s56 = sphi 0, %s54
      %s57 = sphi 0, %s56
      %s71 = sphi 0, %s57
      %s75 = sphi 0, %s75
      %s77 = sphi 0, %s75
      %s78 = sphi 0, %s77
      %s92 = sphi 0, %s78
      %s96 = sphi 0, %s96
      %s98 = sphi 0, %s96
      %s99 = sphi 0, %s98
      %s113 = sphi 0, %s99
      %s117 = sphi 0, %s117
      %s119 = sphi 0, %s117
      %s120 = sphi 0, %s119
      %s134 = sphi 0, %s120
      %s138 = sphi 0, %s138
      %s140 = sphi 0, %s138
      %s141 = sphi 0, %s140
      %s155 = sphi 0, %s141
      %s159 = sphi 0, %s159
      %s161 = sphi 0, %s159
      %s162 = sphi 0, %s161
      %s176 = sphi 0, %s162
      %s182 = sphi 0, %s184
      %s185 = sphi 0, %s182
      %s186 = sphi 0, %s185
      %s202 = sphi 0, %s186
    $region4: #{encoder_block.1} parent=1 // loop_header_branch
      %23 = sbr.rel (%p21) target = $region8
    $region5: #{encoder_block.1} parent=1 // loop_body
      %s25 = ssub.s32 %s20, 1
      %s26 = ssub.s32 %s20, 2
      %s27 = sadd.s32 %s20, 1
      %s28 = ssub.s32 %s20, %s27
      %p29 = scmp.eq.s32.totalorder %s28, 0
      %s31 = sadd.s32 %s30, 1
      %s32 = scalar_select %p29, %s30, %s31
      %p35 = pneg %p29
      %p36 = scmp.eq.s32.totalorder %s20, 1
      %p37 = por %p35, %p36
      %p38 = scmp.ne.s32.totalorder %s30, %s33
      %p39 = scmp.eq.s32.totalorder %s20, 0
      %p40 = por %p38, %p39
      %p41 = scmp.ne.s32.totalorder %s30, %s33
      %p42 = scmp.eq.s32.totalorder %s25, 1
      %p43 = por %p41, %p42
      %p44 = scmp.ne.s32.totalorder %s33, %s34
      %p45 = scmp.eq.s32.totalorder %s25, 0
      %p46 = por %p44, %p45
      %p47 = scmp.ne.s32.totalorder %s33, %s34
      %p48 = scmp.eq.s32.totalorder %s26, 1
      %p49 = por %p47, %p48
      %p51 = scmp.ne.s32.totalorder %s34, %s50
      %p52 = scmp.eq.s32.totalorder %s26, 0
      %p53 = por %p51, %p52
      %s55 = sadd.s32 %s54, 1
      %p58 = scmp.eq.s32.totalorder %s20, 1
      %p59 = scmp.ne.s32.totalorder %s54, %s56
      %p60 = scmp.eq.s32.totalorder %s20, 0
      %p61 = por %p59, %p60
      %p62 = scmp.ne.s32.totalorder %s54, %s56
      %p63 = scmp.eq.s32.totalorder %s25, 1
      %p64 = por %p62, %p63
      %p65 = scmp.ne.s32.totalorder %s56, %s57
      %p66 = scmp.eq.s32.totalorder %s25, 0
      %p67 = por %p65, %p66
      %p68 = scmp.ne.s32.totalorder %s56, %s57
      %p69 = scmp.eq.s32.totalorder %s26, 1
      %p70 = por %p68, %p69
      %p72 = scmp.ne.s32.totalorder %s57, %s71
      %p73 = scmp.eq.s32.totalorder %s26, 0
      %p74 = por %p72, %p73
      %s76 = sadd.s32 %s75, 1
      %p79 = scmp.eq.s32.totalorder %s20, 1
      %p80 = scmp.ne.s32.totalorder %s75, %s77
      %p81 = scmp.eq.s32.totalorder %s20, 0
      %p82 = por %p80, %p81
      %p83 = scmp.ne.s32.totalorder %s75, %s77
      %p84 = scmp.eq.s32.totalorder %s25, 1
      %p85 = por %p83, %p84
      %p86 = scmp.ne.s32.totalorder %s77, %s78
      %p87 = scmp.eq.s32.totalorder %s25, 0
      %p88 = por %p86, %p87
      %p89 = scmp.ne.s32.totalorder %s77, %s78
      %p90 = scmp.eq.s32.totalorder %s26, 1
      %p91 = por %p89, %p90
      %p93 = scmp.ne.s32.totalorder %s78, %s92
      %p94 = scmp.eq.s32.totalorder %s26, 0
      %p95 = por %p93, %p94
      %s97 = sadd.s32 %s96, 1
      %p100 = scmp.eq.s32.totalorder %s20, 1
      %p101 = scmp.ne.s32.totalorder %s96, %s98
      %p102 = scmp.eq.s32.totalorder %s20, 0
      %p103 = por %p101, %p102
      %p104 = scmp.ne.s32.totalorder %s96, %s98
      %p105 = scmp.eq.s32.totalorder %s25, 1
      %p106 = por %p104, %p105
      %p107 = scmp.ne.s32.totalorder %s98, %s99
      %p108 = scmp.eq.s32.totalorder %s25, 0
      %p109 = por %p107, %p108
      %p110 = scmp.ne.s32.totalorder %s98, %s99
      %p111 = scmp.eq.s32.totalorder %s26, 1
      %p112 = por %p110, %p111
      %p114 = scmp.ne.s32.totalorder %s99, %s113
      %p115 = scmp.eq.s32.totalorder %s26, 0
      %p116 = por %p114, %p115
      %s118 = sadd.s32 %s117, 1
      %p121 = scmp.eq.s32.totalorder %s20, 1
      %p122 = scmp.ne.s32.totalorder %s117, %s119
      %p123 = scmp.eq.s32.totalorder %s20, 0
      %p124 = por %p122, %p123
      %p125 = scmp.ne.s32.totalorder %s117, %s119
      %p126 = scmp.eq.s32.totalorder %s25, 1
      %p127 = por %p125, %p126
      %p128 = scmp.ne.s32.totalorder %s119, %s120
      %p129 = scmp.eq.s32.totalorder %s25, 0
      %p130 = por %p128, %p129
      %p131 = scmp.ne.s32.totalorder %s119, %s120
      %p132 = scmp.eq.s32.totalorder %s26, 1
      %p133 = por %p131, %p132
      %p135 = scmp.ne.s32.totalorder %s120, %s134
      %p136 = scmp.eq.s32.totalorder %s26, 0
      %p137 = por %p135, %p136
      %s139 = sadd.s32 %s138, 1
      %p142 = scmp.eq.s32.totalorder %s20, 1
      %p143 = scmp.ne.s32.totalorder %s138, %s140
      %p144 = scmp.eq.s32.totalorder %s20, 0
      %p145 = por %p143, %p144
      %p146 = scmp.ne.s32.totalorder %s138, %s140
      %p147 = scmp.eq.s32.totalorder %s25, 1
      %p148 = por %p146, %p147
      %p149 = scmp.ne.s32.totalorder %s140, %s141
      %p150 = scmp.eq.s32.totalorder %s25, 0
      %p151 = por %p149, %p150
      %p152 = scmp.ne.s32.totalorder %s140, %s141
      %p153 = scmp.eq.s32.totalorder %s26, 1
      %p154 = por %p152, %p153
      %p156 = scmp.ne.s32.totalorder %s141, %s155
      %p157 = scmp.eq.s32.totalorder %s26, 0
      %p158 = por %p156, %p157
      %s160 = sadd.s32 %s159, 1
      %p163 = scmp.eq.s32.totalorder %s20, 1
      %p164 = scmp.ne.s32.totalorder %s159, %s161
      %p165 = scmp.eq.s32.totalorder %s20, 0
      %p166 = por %p164, %p165
      %p167 = scmp.ne.s32.totalorder %s159, %s161
      %p168 = scmp.eq.s32.totalorder %s25, 1
      %p169 = por %p167, %p168
      %p170 = scmp.ne.s32.totalorder %s161, %s162
      %p171 = scmp.eq.s32.totalorder %s25, 0
      %p172 = por %p170, %p171
      %p173 = scmp.ne.s32.totalorder %s161, %s162
      %p174 = scmp.eq.s32.totalorder %s26, 1
      %p175 = por %p173, %p174
      %p177 = scmp.ne.s32.totalorder %s162, %s176
      %p178 = scmp.eq.s32.totalorder %s26, 0
      %p179 = por %p177, %p178
      %s180 = ssub.s32 %s20, %s27
      %p181 = scmp.eq.s32.totalorder %s180, 0
      %s183 = sadd.s32 %s182, 1
      %s184 = scalar_select %p181, %s182, %s183
      %p187 = pneg %p181
      %p188 = scmp.eq.s32.totalorder %s20, 1
      %p189 = por %p187, %p188
      %p190 = scmp.ne.s32.totalorder %s182, %s185
      %p191 = scmp.eq.s32.totalorder %s20, 0
      %p192 = por %p190, %p191
      %p193 = scmp.ne.s32.totalorder %s182, %s185
      %p194 = scmp.eq.s32.totalorder %s25, 1
      %p195 = por %p193, %p194
      %p196 = scmp.ne.s32.totalorder %s185, %s186
      %p197 = scmp.eq.s32.totalorder %s25, 0
      %p198 = por %p196, %p197
      %p199 = scmp.ne.s32.totalorder %s185, %s186
      %p200 = scmp.eq.s32.totalorder %s26, 1
      %p201 = por %p199, %p200
      %p203 = scmp.ne.s32.totalorder %s186, %s202
      %p204 = scmp.eq.s32.totalorder %s26, 0
      %p205 = por %p203, %p204
      %p206 = scmp.le.s32.totalorder 1, %s20
      %p207 = scmp.lt.s32.totalorder %s20, 3
      %p208 = pnand %p206, %p207
      %p209 = pneg %p208
      // Predicated region
      $region9: #{encoder_block.1} parent=5 // pred_check
        _
      $region10: #{encoder_block.1} parent=5 // pred_check_branch
        %211 = sbr.rel (%p208) target = $region12
      $region11: #{encoder_block.1} parent=5 // pred_region
        %s212 = ssub.s32 %s20, 1
        // Predicated region
        $region13: #{encoder_block.1} parent=11 // pred_check
          %p213 = pneg %p67
        $region14: #{encoder_block.1} parent=11 // pred_check_branch
          %215 = sbr.rel (%p213) target = $region16
        $region15: #{encoder_block.1} parent=11 // pred_region
          _
        $region16: #{encoder_block.1} parent=11 // pred_fallthru
          _
        // Predicated region
        $region17: #{encoder_block.1} parent=11 // pred_check
          %p216 = pneg %p88
        $region18: #{encoder_block.1} parent=11 // pred_check_branch
          %218 = sbr.rel (%p216) target = $region20
        $region19: #{encoder_block.1} parent=11 // pred_region
          %220 = vsyncadd [#allocation6], 0
          %s221 = sshll.u32 %s2, 4
          %s222 = int_to_ptr.hbm [resolvable:$true] %s221
          %s223 = sshll.u32 [#allocation5], 4
          %s224 = int_to_ptr.vmem [resolvable:$true] %s223
          %229 = dma.hbm_to_vmem [thread:$0]  %s222, 256, %s224, [#allocation6], 128, 128, 8
        $region20: #{encoder_block.1} parent=11 // pred_fallthru
          _
        // Predicated region
        $region21: #{encoder_block.1} parent=11 // pred_check
          %p230 = pneg %p109
        $region22: #{encoder_block.1} parent=11 // pred_check_branch
          %232 = sbr.rel (%p230) target = $region24
        $region23: #{encoder_block.1} parent=11 // pred_region
          _
        $region24: #{encoder_block.1} parent=11 // pred_fallthru
          _
        // Predicated region
        $region25: #{encoder_block.1} parent=11 // pred_check
          %p233 = pneg %p130
        $region26: #{encoder_block.1} parent=11 // pred_check_branch
          %235 = sbr.rel (%p233) target = $region28
        $region27: #{encoder_block.1} parent=11 // pred_region
          _
        $region28: #{encoder_block.1} parent=11 // pred_fallthru
          _
        // Predicated region
        $region29: #{encoder_block.1} parent=11 // pred_check
          %p236 = pneg %p151
        $region30: #{encoder_block.1} parent=11 // pred_check_branch
          %238 = sbr.rel (%p236) target = $region32
        $region31: #{encoder_block.1} parent=11 // pred_region
          _
        $region32: #{encoder_block.1} parent=11 // pred_fallthru
          _
        // Predicated region
        $region33: #{encoder_block.1} parent=11 // pred_check
          %p239 = pneg %p172
        $region34: #{encoder_block.1} parent=11 // pred_check_branch
          %241 = sbr.rel (%p239) target = $region36
        $region35: #{encoder_block.1} parent=11 // pred_region
          _
        $region36: #{encoder_block.1} parent=11 // pred_fallthru
          _
      $region12: #{encoder_block.1} parent=5 // pred_fallthru
        _
      %p242 = scmp.lt.s32.totalorder %s20, 2
      // Predicated region
      $region37: #{encoder_block.1} parent=5 // pred_check
        %p243 = pneg %p242
      $region38: #{encoder_block.1} parent=5 // pred_check_branch
        %245 = sbr.rel (%p243) target = $region40
      $region39: #{encoder_block.1} parent=5 // pred_region
        // Predicated region
        $region41: #{encoder_block.1} parent=39 // pred_check
          %p246 = pneg %p40
        $region42: #{encoder_block.1} parent=39 // pred_check_branch
          %248 = sbr.rel (%p246) target = $region44
        $region43: #{encoder_block.1} parent=39 // pred_region
          %s249 = sand.u32 %s30, 1
          %s250 = scalar_lea.sflag [#allocation3], %s249
          %s251 = sand.u32 %s30, 1
          %s252 = smul.addr %s251, 8
          %s253 = scalar_lea.vmem [#allocation2], %s252
          %255 = vsyncadd %s250, 0
          %s256 = smul.addr %s20, 8
          %s257 = scalar_lea.hbm %s0, %s256
          %s259 = sshll.u32 %s257, 4
          %s260 = int_to_ptr.hbm [resolvable:$true] %s259
          %s261 = sshll.u32 %s253, 4
          %s262 = int_to_ptr.vmem [resolvable:$true] %s261
          %264 = dma.hbm_to_vmem [thread:$0]  %s260, 128, %s262, %s250
        $region44: #{encoder_block.1} parent=39 // pred_fallthru
          _
      $region40: #{encoder_block.1} parent=5 // pred_fallthru
        _
      %p265 = scmp.le.s32.totalorder 1, %s20
      %p266 = scmp.lt.s32.totalorder %s20, 3
      %p267 = pnand %p265, %p266
      %p268 = pneg %p267
      // Predicated region
      $region45: #{encoder_block.1} parent=5 // pred_check
        _
      $region46: #{encoder_block.1} parent=5 // pred_check_branch
        %270 = sbr.rel (%p267) target = $region48
      $region47: #{encoder_block.1} parent=5 // pred_region
        %s271 = ssub.s32 %s20, 1
        %s272 = sand.u32 %s33, 1
        %s273 = scalar_lea.sflag [#allocation3], %s272
        %s274 = sand.u32 %s33, 1
        %s275 = smul.addr %s274, 8
        %s276 = scalar_lea.vmem [#allocation2], %s275
        // Predicated region
        $region49: #{encoder_block.1} parent=47 // pred_check
          %p277 = pneg %p46
        $region50: #{encoder_block.1} parent=47 // pred_check_branch
          %279 = sbr.rel (%p277) target = $region52
        $region51: #{encoder_block.1} parent=47 // pred_region
          %281 = dma.done %s273, 128
        $region52: #{encoder_block.1} parent=47 // pred_fallthru
          _
        // Predicated region
        $region53: #{encoder_block.1} parent=47 // pred_check
          %p282 = pneg %p88
        $region54: #{encoder_block.1} parent=47 // pred_check_branch
          %284 = sbr.rel (%p282) target = $region56
        $region55: #{encoder_block.1} parent=47 // pred_region
          %286 = dma.done [#allocation6], 256
        $region56: #{encoder_block.1} parent=47 // pred_fallthru
          _
        %s287 = sand.u32 %s33, 1
        %s288 = scalar_lea.sflag [#allocation3], %s287
        %s289 = sand.u32 %s33, 1
        %s290 = smul.addr %s289, 8
        %s291 = scalar_lea.vmem [#allocation2], %s290
        %p292 = pneg %p46
        %p293 = pneg %p43
        %p294 = pneg %p67
        %p295 = pneg %p64
        %p296 = pneg %p88
        %p297 = pneg %p85
        %p298 = pneg %p109
        %p299 = pneg %p106
        %p300 = pneg %p130
        %p301 = pneg %p127
        %p302 = pneg %p151
        %p303 = pneg %p148
        %p304 = pneg %p172
        %p305 = pneg %p169
        %p306 = pneg %p198
        %p307 = pneg %p195
        %s308 = sand.u32 %s185, 1
        %s309 = scalar_lea.sflag [#allocation4], %s308
        %s310 = sand.u32 %s185, 1
        %s311 = smul.addr %s310, 8
        %s312 = scalar_lea.vmem [#allocation7], %s311
        %v314 = vld [vmem:[%s276] sm:$0xff]
        %v315 = vmul.f32 %v314, %v314
        %vm316 = vcmask 523264
        %v317 = vsel %vm316, %v315, 0.0
        %318 = vadd.xlane.f32.xlu0 %v317
        %v319 = vpop.xlane.xlu0 %318
        %v320 = vrcp.pop 64.0
        %v321 = vmul.f32 64.0, %v320
        %v322 = vsub.f32 1.0, %v321
        %v323 = vmul.f32 %v320, %v322
        %v324 = vadd.f32 %v320, %v323
        %vm325 = vweird.f32 %v320
        %v326 = vsel %vm325, %v320, %v324
        %v327 = vmul.f32 %v319, %v326
        %v328 = vld [vmem:[%s1] sm:$0x1]
        %v329 = vadd.f32 %v327, 1e-05
        %v330 = vrsqrt.pop %v329
        %v331 = vmul.f32 %v330, %v329
        %v332 = vmul.f32 %v331, %v330
        %v333 = vmul.f32 0.5, %v332
        %v334 = vsub.f32 1.5, %v333
        %v335 = vmul.f32 %v330, %v334
        %vm336 = vweird.f32 %v329
        %vm337 = vweird.f32 %v330
        %vm338 = vmor %vm336, %vm337
        %v339 = vsel %vm338, %v330, %v335
        %v340 = vmul.f32 %v314, %v339
        %v341 = vperm.slane %v328, 0
        %v342 = vmul.f32 %v341, %v340
        %v343 = vpack.c.bf16 %v342, %v342
        %v344 = vld [vmem:[%s3] sm:$0xf]
        %v345 = vld [vmem:[%s3 + $0x4] sm:$0xf]
        %v346 = vld [vmem:[%s3 + $0x8] sm:$0xf]
        %v347 = vld [vmem:[%s3 + $0xc] sm:$0xf]
        %v348 = vld [vmem:[%s3 + $0x10] sm:$0xf]
        %v349 = vld [vmem:[%s3 + $0x14] sm:$0xf]
        %v350 = vld [vmem:[%s3 + $0x18] sm:$0xf]
        %v351 = vld [vmem:[%s3 + $0x1c] sm:$0xf]
        %v360 = vunpack.c.l.b16 %v344
        %v361 = vunpack.c.l.b16 %v345
        %v362 = vunpack.c.l.b16 %v346
        %v363 = vunpack.c.l.b16 %v347
        %v364 = vunpack.c.l.b16 %v348
        %v365 = vunpack.c.l.b16 %v349
        %v366 = vunpack.c.l.b16 %v350
        %v367 = vunpack.c.l.b16 %v351
        %v368 = vpack.c.b16 %v361, %v360
        %v369 = vpack.c.b16 %v363, %v362
        %v370 = vpack.c.b16 %v365, %v364
        %v371 = vpack.c.b16 %v367, %v366
        %v377 = vsel %vm316, %v343, 0
        %379 = vmatpush.bf16.msra.mxu0 0
        %380 = vmatpush.bf16.msra.mxu0 0
        %381 = vmatpush.bf16.msra.mxu0 0
        %382 = vmatpush.bf16.msra.mxu0 0
        %383 = vmatpush.bf16.msra.mxu0 %v371
        %384 = vmatpush.bf16.msra.mxu0 %v370
        %385 = vmatpush.bf16.msra.mxu0 %v369
        %386 = vmatpush.bf16.msra.mxu0 %v368
        %387 = vmatmul.bf16.gmra.mxu0 %v377
        %v388 = vpop.f32.mrf.mxu0
        %v389 = vadd.f32 0.0, %v388
        %v390 = vpop.f32.mrf.mxu0
        %391 = vdwg.mxu0
        %v392 = vlaneseq
        %v393 = vand.u32 %v392, 127
        %vm394 = vcmp.lt.s32.totalorder %v393, 0
        %v395 = vsub.s32 0, %v393
        %v396 = vsel %vm394, %v395, %v393
        %v397 = vshrl.u32 %v396, 1
        %v398 = vand.u32 %v396, 1
        %v399 = vsub.s32 0, %v398
        %v400 = vsel %vm394, %v399, %v398
        %vm401 = vcmp.ne.s32.totalorder %v400, 0
        %vm402 = vcmp.lt.s32.totalorder %v400, 0
        %vm403 = vmand %vm402, %vm401
        %v404 = vadd.s32 %v400, 2
        %v405 = vsel %vm403, %v404, %v400
        %vm406 = vcmp.eq.s32.totalorder %v405, 0
        %407 = vrot.lane.b32.xlu0 %v389, 127
        %v408 = vpop.permute.xlu0 %407
        %409 = vrot.lane.b32.xlu0 %v389, 1
        %v410 = vpop.permute.xlu0 %409
        %v411 = vsel %vm406, %v408, %v410
        %v412 = vld [vmem:[#allocation5] sm:$0xff]
        %v413 = vmul.f32 %v389, %v412
        %s414 = scalar_lea.vmem [#allocation5], 8
        %v415 = vld [vmem:[%s414] sm:$0xff]
        %v416 = vmul.f32 %v411, %v415
        %v417 = vadd.f32 %v413, %v416
        %v418 = vpack.c.bf16 %v417, %v417
        %420 = vrot.lane.b32.xlu0 %v418, 64
        %v421 = vpop.permute.xlu0 %420
        %vm422 = vcmask 130048
        %v424 = vsel %vm422, %v418, 0
        %v427 = vsel %vm422, %v421, 0
        %429 = vmatpush.bf16.xpose.msra.mxu0 0
        %430 = vmatpush.bf16.xpose.msra.mxu0 0
        %431 = vmatpush.bf16.xpose.msra.mxu0 0
        %432 = vmatpush.bf16.xpose.msra.mxu0 0
        %433 = vmatpush.bf16.xpose.msra.mxu0 0
        %434 = vmatpush.bf16.xpose.msra.mxu0 0
        %435 = vmatpush.bf16.xpose.msra.mxu0 0
        %436 = vmatpush.bf16.xpose.msra.mxu0 %v427
        %437 = vmatmul.bf16.gmra.mxu0 %v424
        %v438 = vpop.f32.mrf.mxu0
        %v439 = vadd.f32 0.0, %v438
        %v440 = vpop.f32.mrf.mxu0
        %441 = vdwg.mxu0
        %vm442 = vcmask 64512
        %v443 = vsel %vm442, %v439, -inf
        %444 = vmax.xlane.f32.xlu0 %v443
        %v445 = vpop.xlane.xlu0 %444
        %v446 = vsub.f32 %v439, %v445
        %v447 = vmul.f32 %v446, 1.442695
        %v448 = vpow.pop %v447
        %v449 = vsel %vm442, %v448, 0.0
        %450 = vadd.xlane.f32.xlu0 %v449
        %v451 = vpop.xlane.xlu0 %450
        %v452 = vpack.c.bf16 %v448, %v448
        %453 = vrot.lane.b32.xlu0 %v418, 32
        %v454 = vpop.permute.xlu0 %453
        %v456 = vsel %vm442, %v452, 0
        %vm458 = vcmask 1043456
        %v460 = vsel %vm458, %v454, 0
        %462 = vmatpush.bf16.msra.mxu0 0
        %463 = vmatpush.bf16.msra.mxu0 0
        %464 = vmatpush.bf16.msra.mxu0 0
        %465 = vmatpush.bf16.msra.mxu0 0
        %466 = vmatpush.bf16.msra.mxu0 0
        %467 = vmatpush.bf16.msra.mxu0 0
        %468 = vmatpush.bf16.msra.mxu0 0
        %469 = vmatpush.bf16.msra.mxu0 %v460
        %470 = vmatmul.bf16.gmra.mxu0 %v456
        %v471 = vpop.f32.mrf.mxu0
        %v472 = vadd.f32 0.0, %v471
        %v473 = vpop.f32.mrf.mxu0
        %474 = vdwg.mxu0
        %v475 = vrcp.pop %v451
        %v476 = vmul.f32 %v472, %v475
        %v477 = vpack.c.bf16 %v476, %v476
        %v478 = vld [vmem:[%s4] sm:$0xf]
        %v479 = vld [vmem:[%s4 + $0x4] sm:$0xf]
        %480 = vrot.lane.b32.xlu0 %v418, 112
        %v481 = vpop.permute.xlu0 %480
        %v483 = vsel %vm422, %v481, 0
        %485 = vmatpush.bf16.xpose.msra.mxu0 0
        %486 = vmatpush.bf16.xpose.msra.mxu0 0
        %487 = vmatpush.bf16.xpose.msra.mxu0 0
        %488 = vmatpush.bf16.xpose.msra.mxu0 0
        %489 = vmatpush.bf16.xpose.msra.mxu0 0
        %490 = vmatpush.bf16.xpose.msra.mxu0 0
        %491 = vmatpush.bf16.xpose.msra.mxu0 0
        %492 = vmatpush.bf16.xpose.msra.mxu0 %v427
        %493 = vmatmul.bf16.gmra.mxu0 %v483
        %v494 = vpop.f32.mrf.mxu0
        %v495 = vadd.f32 0.0, %v494
        %v496 = vpop.f32.mrf.mxu0
        %497 = vdwg.mxu0
        %v498 = vsel %vm442, %v495, -inf
        %499 = vmax.xlane.f32.xlu0 %v498
        %v500 = vpop.xlane.xlu0 %499
        %v501 = vsub.f32 %v495, %v500
        %v502 = vmul.f32 %v501, 1.442695
        %v503 = vpow.pop %v502
        %v504 = vsel %vm442, %v503, 0.0
        %505 = vadd.xlane.f32.xlu0 %v504
        %v506 = vpop.xlane.xlu0 %505
        %v507 = vpack.c.bf16 %v503, %v503
        %v509 = vsel %vm442, %v507, 0
        %511 = vmatpush.bf16.msra.mxu0 0
        %512 = vmatpush.bf16.msra.mxu0 0
        %513 = vmatpush.bf16.msra.mxu0 0
        %514 = vmatpush.bf16.msra.mxu0 0
        %515 = vmatpush.bf16.msra.mxu0 0
        %516 = vmatpush.bf16.msra.mxu0 0
        %517 = vmatpush.bf16.msra.mxu0 0
        %518 = vmatpush.bf16.msra.mxu0 %v460
        %519 = vmatmul.bf16.gmra.mxu0 %v509
        %v520 = vpop.f32.mrf.mxu0
        %v521 = vadd.f32 0.0, %v520
        %v522 = vpop.f32.mrf.mxu0
        %523 = vdwg.mxu0
        %v524 = vrcp.pop %v506
        %v525 = vmul.f32 %v521, %v524
        %v526 = vpack.c.bf16 %v525, %v525
        %v527 = vld [vmem:[%s4 + $0x8] sm:$0xf]
        %v528 = vld [vmem:[%s4 + $0xc] sm:$0xf]
        %v531 = vunpack.c.l.b16 %v527
        %v532 = vunpack.c.l.b16 %v528
        %v533 = vpack.c.b16 %v532, %v531
        %v536 = vsel %vm422, %v526, 0
        %538 = vmatpush.bf16.msra.mxu0 0
        %539 = vmatpush.bf16.msra.mxu0 0
        %540 = vmatpush.bf16.msra.mxu0 0
        %541 = vmatpush.bf16.msra.mxu0 0
        %542 = vmatpush.bf16.msra.mxu0 0
        %543 = vmatpush.bf16.msra.mxu0 0
        %544 = vmatpush.bf16.msra.mxu0 0
        %545 = vmatpush.bf16.msra.mxu0 %v533
        %546 = vmatmul.bf16.gmra.mxu0 %v536
        %v547 = vpop.f32.mrf.mxu0
        %v548 = vadd.f32 0.0, %v547
        %v549 = vpop.f32.mrf.mxu0
        %550 = vdwg.mxu0
        %v553 = vunpack.c.l.b16 %v478
        %v554 = vunpack.c.l.b16 %v479
        %v555 = vpack.c.b16 %v554, %v553
        %v558 = vsel %vm422, %v477, 0
        %560 = vmatpush.bf16.msra.mxu0 0
        %561 = vmatpush.bf16.msra.mxu0 0
        %562 = vmatpush.bf16.msra.mxu0 0
        %563 = vmatpush.bf16.msra.mxu0 0
        %564 = vmatpush.bf16.msra.mxu0 0
        %565 = vmatpush.bf16.msra.mxu0 0
        %566 = vmatpush.bf16.msra.mxu0 0
        %567 = vmatpush.bf16.msra.mxu0 %v555
        %568 = vmatmul.bf16.gmra.mxu0 %v558
        %v569 = vpop.f32.mrf.mxu0
        %v570 = vadd.f32 %v548, %v569
        %v571 = vpop.f32.mrf.mxu0
        %572 = vdwg.mxu0
        %573 = vrot.lane.b32.xlu0 %v418, 96
        %v574 = vpop.permute.xlu0 %573
        %575 = vrot.lane.b32.xlu0 %v418, 48
        %v576 = vpop.permute.xlu0 %575
        %v578 = vsel %vm422, %v574, 0
        %v581 = vsel %vm422, %v576, 0
        %583 = vmatpush.bf16.xpose.msra.mxu0 0
        %584 = vmatpush.bf16.xpose.msra.mxu0 0
        %585 = vmatpush.bf16.xpose.msra.mxu0 0
        %586 = vmatpush.bf16.xpose.msra.mxu0 0
        %587 = vmatpush.bf16.xpose.msra.mxu0 0
        %588 = vmatpush.bf16.xpose.msra.mxu0 0
        %589 = vmatpush.bf16.xpose.msra.mxu0 0
        %590 = vmatpush.bf16.xpose.msra.mxu0 %v581
        %591 = vmatmul.bf16.gmra.mxu0 %v578
        %v592 = vpop.f32.mrf.mxu0
        %v593 = vadd.f32 0.0, %v592
        %v594 = vpop.f32.mrf.mxu0
        %595 = vdwg.mxu0
        %v596 = vsel %vm442, %v593, -inf
        %597 = vmax.xlane.f32.xlu0 %v596
        %v598 = vpop.xlane.xlu0 %597
        %v599 = vsub.f32 %v593, %v598
        %v600 = vmul.f32 %v599, 1.442695
        %v601 = vpow.pop %v600
        %v602 = vsel %vm442, %v601, 0.0
        %603 = vadd.xlane.f32.xlu0 %v602
        %v604 = vpop.xlane.xlu0 %603
        %v605 = vpack.c.bf16 %v601, %v601
        %606 = vrot.lane.b32.xlu0 %v418, 16
        %v607 = vpop.permute.xlu0 %606
        %v609 = vsel %vm442, %v605, 0
        %v612 = vsel %vm458, %v607, 0
        %614 = vmatpush.bf16.msra.mxu0 0
        %615 = vmatpush.bf16.msra.mxu0 0
        %616 = vmatpush.bf16.msra.mxu0 0
        %617 = vmatpush.bf16.msra.mxu0 0
        %618 = vmatpush.bf16.msra.mxu0 0
        %619 = vmatpush.bf16.msra.mxu0 0
        %620 = vmatpush.bf16.msra.mxu0 0
        %621 = vmatpush.bf16.msra.mxu0 %v612
        %622 = vmatmul.bf16.gmra.mxu0 %v609
        %v623 = vpop.f32.mrf.mxu0
        %v624 = vadd.f32 0.0, %v623
        %v625 = vpop.f32.mrf.mxu0
        %626 = vdwg.mxu0
        %v627 = vrcp.pop %v604
        %v628 = vmul.f32 %v624, %v627
        %v629 = vpack.c.bf16 %v628, %v628
        %v630 = vld [vmem:[%s4 + $0x10] sm:$0xf]
        %v631 = vld [vmem:[%s4 + $0x14] sm:$0xf]
        %v634 = vunpack.c.l.b16 %v630
        %v635 = vunpack.c.l.b16 %v631
        %v636 = vpack.c.b16 %v635, %v634
        %v639 = vsel %vm422, %v629, 0
        %641 = vmatpush.bf16.msra.mxu0 0
        %642 = vmatpush.bf16.msra.mxu0 0
        %643 = vmatpush.bf16.msra.mxu0 0
        %644 = vmatpush.bf16.msra.mxu0 0
        %645 = vmatpush.bf16.msra.mxu0 0
        %646 = vmatpush.bf16.msra.mxu0 0
        %647 = vmatpush.bf16.msra.mxu0 0
        %648 = vmatpush.bf16.msra.mxu0 %v636
        %649 = vmatmul.bf16.gmra.mxu0 %v639
        %v650 = vpop.f32.mrf.mxu0
        %v651 = vadd.f32 0.0, %v650
        %v652 = vpop.f32.mrf.mxu0
        %653 = vdwg.mxu0
        %v654 = vadd.f32 %v570, %v651
        %655 = vrot.lane.b32.xlu0 %v418, 80
        %v656 = vpop.permute.xlu0 %655
        %v658 = vsel %vm422, %v656, 0
        %660 = vmatpush.bf16.xpose.msra.mxu0 0
        %661 = vmatpush.bf16.xpose.msra.mxu0 0
        %662 = vmatpush.bf16.xpose.msra.mxu0 0
        %663 = vmatpush.bf16.xpose.msra.mxu0 0
        %664 = vmatpush.bf16.xpose.msra.mxu0 0
        %665 = vmatpush.bf16.xpose.msra.mxu0 0
        %666 = vmatpush.bf16.xpose.msra.mxu0 0
        %667 = vmatpush.bf16.xpose.msra.mxu0 %v581
        %668 = vmatmul.bf16.gmra.mxu0 %v658
        %v669 = vpop.f32.mrf.mxu0
        %v670 = vadd.f32 0.0, %v669
        %v671 = vpop.f32.mrf.mxu0
        %672 = vdwg.mxu0
        %v673 = vsel %vm442, %v670, -inf
        %674 = vmax.xlane.f32.xlu0 %v673
        %v675 = vpop.xlane.xlu0 %674
        %v676 = vsub.f32 %v670, %v675
        %v677 = vmul.f32 %v676, 1.442695
        %v678 = vpow.pop %v677
        %v679 = vsel %vm442, %v678, 0.0
        %680 = vadd.xlane.f32.xlu0 %v679
        %v681 = vpop.xlane.xlu0 %680
        %v682 = vpack.c.bf16 %v678, %v678
        %v684 = vsel %vm442, %v682, 0
        %686 = vmatpush.bf16.msra.mxu0 0
        %687 = vmatpush.bf16.msra.mxu0 0
        %688 = vmatpush.bf16.msra.mxu0 0
        %689 = vmatpush.bf16.msra.mxu0 0
        %690 = vmatpush.bf16.msra.mxu0 0
        %691 = vmatpush.bf16.msra.mxu0 0
        %692 = vmatpush.bf16.msra.mxu0 0
        %693 = vmatpush.bf16.msra.mxu0 %v612
        %694 = vmatmul.bf16.gmra.mxu0 %v684
        %v695 = vpop.f32.mrf.mxu0
        %v696 = vadd.f32 0.0, %v695
        %v697 = vpop.f32.mrf.mxu0
        %698 = vdwg.mxu0
        %v699 = vrcp.pop %v681
        %v700 = vmul.f32 %v696, %v699
        %v701 = vpack.c.bf16 %v700, %v700
        %v702 = vld [vmem:[%s4 + $0x18] sm:$0xf]
        %v703 = vld [vmem:[%s4 + $0x1c] sm:$0xf]
        %v706 = vunpack.c.l.b16 %v702
        %v707 = vunpack.c.l.b16 %v703
        %v708 = vpack.c.b16 %v707, %v706
        %v711 = vsel %vm422, %v701, 0
        %713 = vmatpush.bf16.msra.mxu0 0
        %714 = vmatpush.bf16.msra.mxu0 0
        %715 = vmatpush.bf16.msra.mxu0 0
        %716 = vmatpush.bf16.msra.mxu0 0
        %717 = vmatpush.bf16.msra.mxu0 0
        %718 = vmatpush.bf16.msra.mxu0 0
        %719 = vmatpush.bf16.msra.mxu0 0
        %720 = vmatpush.bf16.msra.mxu0 %v708
        %721 = vmatmul.bf16.gmra.mxu0 %v711
        %v722 = vpop.f32.mrf.mxu0
        %v723 = vadd.f32 0.0, %v722
        %v724 = vpop.f32.mrf.mxu0
        %725 = vdwg.mxu0
        %v726 = vadd.f32 %v654, %v723
        %v727 = vadd.f32 %v314, %v726
        %v728 = vmul.f32 %v727, %v727
        %v729 = vsel %vm316, %v728, 0.0
        %730 = vadd.xlane.f32.xlu0 %v729
        %v731 = vpop.xlane.xlu0 %730
        %v732 = vmul.f32 %v731, %v326
        %v733 = vld [vmem:[%s1 + $0x1] sm:$0x1]
        %v734 = vadd.f32 %v732, 1e-05
        %v735 = vrsqrt.pop %v734
        %v736 = vmul.f32 %v735, %v734
        %v737 = vmul.f32 %v736, %v735
        %v738 = vmul.f32 0.5, %v737
        %v739 = vsub.f32 1.5, %v738
        %v740 = vmul.f32 %v735, %v739
        %vm741 = vweird.f32 %v734
        %vm742 = vweird.f32 %v735
        %vm743 = vmor %vm741, %vm742
        %v744 = vsel %vm743, %v735, %v740
        %v745 = vmul.f32 %v727, %v744
        %v746 = vperm.slane %v733, 0
        %v747 = vmul.f32 %v746, %v745
        %v748 = vpack.c.bf16 %v747, %v747
        %v749 = vld [vmem:[%s5] sm:$0xff]
        %v750 = vld [vmem:[%s5 + $0x8] sm:$0xf]
        %v751 = vld [vmem:[%s5 + $0xc] sm:$0xff]
        %v752 = vld [vmem:[%s5 + $0x14] sm:$0xf]
        %v753 = vld [vmem:[%s5 + $0x18] sm:$0xff]
        %v754 = vld [vmem:[%s5 + $0x20] sm:$0xf]
        %v755 = vld [vmem:[%s5 + $0x24] sm:$0xff]
        %v756 = vld [vmem:[%s5 + $0x2c] sm:$0xf]
        %v757 = vld [vmem:[%s5 + $0x30] sm:$0xff]
        %v758 = vld [vmem:[%s5 + $0x38] sm:$0xf]
        %v759 = vld [vmem:[%s5 + $0x3c] sm:$0xff]
        %v760 = vld [vmem:[%s5 + $0x44] sm:$0xf]
        %v761 = vld [vmem:[%s5 + $0x48] sm:$0xff]
        %v762 = vld [vmem:[%s5 + $0x50] sm:$0xf]
        %v763 = vld [vmem:[%s5 + $0x54] sm:$0xff]
        %v764 = vld [vmem:[%s5 + $0x5c] sm:$0xf]
        %v781 = vunpack.c.l.b16 %v749
        %v782 = vunpack.c.h.b16 %v749
        %v783 = vunpack.c.l.b16 %v750
        %v784 = vunpack.c.l.b16 %v751
        %v785 = vunpack.c.h.b16 %v751
        %v786 = vunpack.c.l.b16 %v752
        %v787 = vunpack.c.l.b16 %v753
        %v788 = vunpack.c.h.b16 %v753
        %v789 = vunpack.c.l.b16 %v754
        %v790 = vunpack.c.l.b16 %v755
        %v791 = vunpack.c.h.b16 %v755
        %v792 = vunpack.c.l.b16 %v756
        %v793 = vunpack.c.l.b16 %v757
        %v794 = vunpack.c.h.b16 %v757
        %v795 = vunpack.c.l.b16 %v758
        %v796 = vunpack.c.l.b16 %v759
        %v797 = vunpack.c.h.b16 %v759
        %v798 = vunpack.c.l.b16 %v760
        %v799 = vunpack.c.l.b16 %v761
        %v800 = vunpack.c.h.b16 %v761
        %v801 = vunpack.c.l.b16 %v762
        %v802 = vunpack.c.l.b16 %v763
        %v803 = vunpack.c.h.b16 %v763
        %v804 = vunpack.c.l.b16 %v764
        %v805 = vpack.c.b16 %v784, %v781
        %v806 = vpack.c.b16 %v785, %v782
        %v807 = vpack.c.b16 %v786, %v783
        %v808 = vpack.c.b16 %v790, %v787
        %v809 = vpack.c.b16 %v791, %v788
        %v810 = vpack.c.b16 %v792, %v789
        %v811 = vpack.c.b16 %v796, %v793
        %v812 = vpack.c.b16 %v797, %v794
        %v813 = vpack.c.b16 %v798, %v795
        %v814 = vpack.c.b16 %v802, %v799
        %v815 = vpack.c.b16 %v803, %v800
        %v816 = vpack.c.b16 %v804, %v801
        %v830 = vsel %vm316, %v748, 0
        %832 = vmatpush.bf16.msra.mxu0 0
        %833 = vmatpush.bf16.msra.mxu0 0
        %834 = vmatpush.bf16.msra.mxu0 0
        %835 = vmatpush.bf16.msra.mxu0 0
        %836 = vmatpush.bf16.msra.mxu0 %v814
        %837 = vmatpush.bf16.msra.mxu0 %v811
        %838 = vmatpush.bf16.msra.mxu0 %v808
        %839 = vmatpush.bf16.msra.mxu0 %v805
        %840 = vmatmul.bf16.gmra.mxu0 %v830
        %v841 = vpop.f32.mrf.mxu0
        %v842 = vadd.f32 0.0, %v841
        %v843 = vpop.f32.mrf.mxu0
        %844 = vdwg.mxu0
        %845 = vmatpush.bf16.msra.mxu0 0
        %846 = vmatpush.bf16.msra.mxu0 0
        %847 = vmatpush.bf16.msra.mxu0 0
        %848 = vmatpush.bf16.msra.mxu0 0
        %849 = vmatpush.bf16.msra.mxu0 %v815
        %850 = vmatpush.bf16.msra.mxu0 %v812
        %851 = vmatpush.bf16.msra.mxu0 %v809
        %852 = vmatpush.bf16.msra.mxu0 %v806
        %853 = vmatmul.bf16.gmra.mxu0 %v830
        %v854 = vpop.f32.mrf.mxu0
        %v855 = vadd.f32 0.0, %v854
        %v856 = vpop.f32.mrf.mxu0
        %857 = vdwg.mxu0
        %858 = vmatpush.bf16.msra.mxu0 0
        %859 = vmatpush.bf16.msra.mxu0 0
        %860 = vmatpush.bf16.msra.mxu0 0
        %861 = vmatpush.bf16.msra.mxu0 0
        %862 = vmatpush.bf16.msra.mxu0 %v816
        %863 = vmatpush.bf16.msra.mxu0 %v813
        %864 = vmatpush.bf16.msra.mxu0 %v810
        %865 = vmatpush.bf16.msra.mxu0 %v807
        %866 = vmatmul.bf16.gmra.mxu0 %v830
        %v867 = vpop.f32.mrf.mxu0
        %v868 = vadd.f32 0.0, %v867
        %v869 = vpop.f32.mrf.mxu0
        %870 = vdwg.mxu0
        %v871 = vxor.u32 %v842, 2147483648
        %v872 = vxor.u32 %v855, 2147483648
        %v873 = vmul.f32 %v871, 1.442695
        %v874 = vpow.pop %v873
        %v875 = vmul.f32 %v872, 1.442695
        %v876 = vpow.pop %v875
        %v877 = vadd.f32 %v874, 1.0
        %v878 = vadd.f32 %v876, 1.0
        %v879 = vrcp.pop %v877
        %v880 = vmul.f32 %v877, %v879
        %v881 = vsub.f32 1.0, %v880
        %v882 = vmul.f32 %v879, %v881
        %v883 = vadd.f32 %v879, %v882
        %vm884 = vweird.f32 %v877
        %vm885 = vweird.f32 %v879
        %vm886 = vmor %vm884, %vm885
        %v887 = vsel %vm886, %v879, %v883
        %v888 = vand.u32 2147483647, %v877
        %vm889 = vcmp.eq.f32.partialorder %v888, 8.507059e+37
        %v890 = vand.u32 %v877, 2147483648
        %v891 = vor.u32 1.1754944e-38, %v890
        %v892 = vsel %vm889, %v891, %v887
        %v893 = vmul.f32 1.0, %v892
        %v894 = vrcp.pop %v878
        %v895 = vmul.f32 %v878, %v894
        %v896 = vsub.f32 1.0, %v895
        %v897 = vmul.f32 %v894, %v896
        %v898 = vadd.f32 %v894, %v897
        %vm899 = vweird.f32 %v878
        %vm900 = vweird.f32 %v894
        %vm901 = vmor %vm899, %vm900
        %v902 = vsel %vm901, %v894, %v898
        %v903 = vand.u32 2147483647, %v878
        %vm904 = vcmp.eq.f32.partialorder %v903, 8.507059e+37
        %v905 = vand.u32 %v878, 2147483648
        %v906 = vor.u32 1.1754944e-38, %v905
        %v907 = vsel %vm904, %v906, %v902
        %v908 = vmul.f32 1.0, %v907
        %v909 = vmul.f32 %v842, %v893
        %v910 = vmul.f32 %v855, %v908
        %913 = vrot.lane.b32.xlu0 %v855, 64
        %v914 = vpop.permute.xlu0 %913
        %915 = vrot.lane.b32.xlu0 %v868, 64
        %v916 = vpop.permute.xlu0 %915
        %v917 = vsel %vm316, %v914, %v916
        %v920 = vmul.f32 %v909, %v917
        %v921 = vmul.f32 %v910, %v916
        %v922 = vpack.c.bf16 %v920, %v920
        %v923 = vpack.c.bf16 %v921, %v921
        %v924 = vld [vmem:[%s6] sm:$0xf]
        %v925 = vld [vmem:[%s6 + $0x4] sm:$0xf]
        %v926 = vld [vmem:[%s6 + $0x8] sm:$0xf]
        %v927 = vld [vmem:[%s6 + $0xc] sm:$0xf]
        %v928 = vld [vmem:[%s6 + $0x10] sm:$0xf]
        %v929 = vld [vmem:[%s6 + $0x14] sm:$0xf]
        %v930 = vld [vmem:[%s6 + $0x18] sm:$0xf]
        %v931 = vld [vmem:[%s6 + $0x1c] sm:$0xf]
        %v932 = vld [vmem:[%s6 + $0x20] sm:$0xf]
        %v933 = vld [vmem:[%s6 + $0x24] sm:$0xf]
        %v934 = vld [vmem:[%s6 + $0x28] sm:$0xf]
        %v935 = vld [vmem:[%s6 + $0x2c] sm:$0xf]
        %v936 = vld [vmem:[%s6 + $0x30] sm:$0xf]
        %v937 = vld [vmem:[%s6 + $0x34] sm:$0xf]
        %v938 = vld [vmem:[%s6 + $0x38] sm:$0xf]
        %v939 = vld [vmem:[%s6 + $0x3c] sm:$0xf]
        %v940 = vld [vmem:[%s6 + $0x40] sm:$0xf]
        %v941 = vld [vmem:[%s6 + $0x44] sm:$0xf]
        %v942 = vld [vmem:[%s6 + $0x48] sm:$0xf]
        %v943 = vld [vmem:[%s6 + $0x4c] sm:$0xf]
        %v944 = vld [vmem:[%s6 + $0x50] sm:$0xf]
        %v945 = vld [vmem:[%s6 + $0x54] sm:$0xf]
        %v946 = vld [vmem:[%s6 + $0x58] sm:$0xf]
        %v947 = vld [vmem:[%s6 + $0x5c] sm:$0xf]
        %v972 = vunpack.c.l.b16 %v924
        %v973 = vunpack.c.l.b16 %v925
        %v974 = vunpack.c.l.b16 %v926
        %v975 = vunpack.c.l.b16 %v927
        %v976 = vunpack.c.l.b16 %v928
        %v977 = vunpack.c.l.b16 %v929
        %v978 = vunpack.c.l.b16 %v930
        %v979 = vunpack.c.l.b16 %v931
        %v980 = vunpack.c.l.b16 %v932
        %v981 = vunpack.c.l.b16 %v933
        %v982 = vunpack.c.l.b16 %v934
        %v983 = vunpack.c.l.b16 %v935
        %v984 = vunpack.c.l.b16 %v936
        %v985 = vunpack.c.l.b16 %v937
        %v986 = vunpack.c.l.b16 %v938
        %v987 = vunpack.c.l.b16 %v939
        %v988 = vunpack.c.l.b16 %v940
        %v989 = vunpack.c.l.b16 %v941
        %v990 = vunpack.c.l.b16 %v942
        %v991 = vunpack.c.l.b16 %v943
        %v992 = vunpack.c.l.b16 %v944
        %v993 = vunpack.c.l.b16 %v945
        %v994 = vunpack.c.l.b16 %v946
        %v995 = vunpack.c.l.b16 %v947
        %v996 = vpack.c.b16 %v973, %v972
        %v997 = vpack.c.b16 %v975, %v974
        %v998 = vpack.c.b16 %v977, %v976
        %v999 = vpack.c.b16 %v979, %v978
        %v1000 = vpack.c.b16 %v981, %v980
        %v1001 = vpack.c.b16 %v983, %v982
        %v1002 = vpack.c.b16 %v985, %v984
        %v1003 = vpack.c.b16 %v987, %v986
        %v1004 = vpack.c.b16 %v989, %v988
        %v1005 = vpack.c.b16 %v991, %v990
        %v1006 = vpack.c.b16 %v993, %v992
        %v1007 = vpack.c.b16 %v995, %v994
        %v1021 = vsel %vm316, %v923, 0
        %1023 = vmatpush.bf16.msra.mxu0 %v1003
        %1024 = vmatpush.bf16.msra.mxu0 %v1002
        %1025 = vmatpush.bf16.msra.mxu0 %v1001
        %1026 = vmatpush.bf16.msra.mxu0 %v1000
        %1027 = vmatpush.bf16.msra.mxu0 %v999
        %1028 = vmatpush.bf16.msra.mxu0 %v998
        %1029 = vmatpush.bf16.msra.mxu0 %v997
        %1030 = vmatpush.bf16.msra.mxu0 %v996
        %1031 = vmatmul.bf16.gmra.mxu0 %v922
        %v1032 = vpop.f32.mrf.mxu0
        %v1033 = vadd.f32 0.0, %v1032
        %v1034 = vpop.f32.mrf.mxu0
        %1035 = vdwg.mxu0
        %1036 = vmatpush.bf16.msra.mxu0 0
        %1037 = vmatpush.bf16.msra.mxu0 0
        %1038 = vmatpush.bf16.msra.mxu0 0
        %1039 = vmatpush.bf16.msra.mxu0 0
        %1040 = vmatpush.bf16.msra.mxu0 %v1007
        %1041 = vmatpush.bf16.msra.mxu0 %v1006
        %1042 = vmatpush.bf16.msra.mxu0 %v1005
        %1043 = vmatpush.bf16.msra.mxu0 %v1004
        %1044 = vmatmul.bf16.gmra.mxu0 %v1021
        %v1045 = vpop.f32.mrf.mxu0
        %v1046 = vadd.f32 %v1033, %v1045
        %v1047 = vpop.f32.mrf.mxu0
        %1048 = vdwg.mxu0
        %v1049 = vadd.f32 %v727, %v1046
        %1050 = vst.msk [vmem:[%s312] sm:$0xff] %vm316, %v1049
        %s1051 = sand.u32 %s185, 1
        %s1052 = scalar_lea.sflag [#allocation4], %s1051
        %s1053 = sand.u32 %s185, 1
        %s1054 = smul.addr %s1053, 8
        %s1055 = scalar_lea.vmem [#allocation7], %s1054
        // Predicated region
        $region57: #{encoder_block.1} parent=47 // pred_check
          %p1056 = pneg %p195
        $region58: #{encoder_block.1} parent=47 // pred_check_branch
          %1058 = sbr.rel (%p1056) target = $region60
        $region59: #{encoder_block.1} parent=47 // pred_region
          %1060 = vsyncadd %s1052, 0
          %s1061 = smul.addr %s25, 8
          %s1062 = scalar_lea.hbm %s7, %s1061
          %s1064 = sshll.u32 %s1055, 4
          %s1065 = int_to_ptr.vmem [resolvable:$true] %s1064
          %s1066 = sshll.u32 %s1062, 4
          %s1067 = int_to_ptr.hbm [resolvable:$true] %s1066
          %1069 = dma.vmem_to_hbm [thread:$0]  %s1065, 128, %s1067, %s1052
        $region60: #{encoder_block.1} parent=47 // pred_fallthru
          _
      $region48: #{encoder_block.1} parent=5 // pred_fallthru
        _
      %p1070 = scmp.le.s32.totalorder 2, %s20
      // Predicated region
      $region61: #{encoder_block.1} parent=5 // pred_check
        %p1071 = pneg %p1070
      $region62: #{encoder_block.1} parent=5 // pred_check_branch
        %1073 = sbr.rel (%p1071) target = $region64
      $region63: #{encoder_block.1} parent=5 // pred_region
        %s1074 = ssub.s32 %s20, 2
        // Predicated region
        $region65: #{encoder_block.1} parent=63 // pred_check
          %p1075 = pneg %p201
        $region66: #{encoder_block.1} parent=63 // pred_check_branch
          %1077 = sbr.rel (%p1075) target = $region68
        $region67: #{encoder_block.1} parent=63 // pred_region
          %s1078 = sand.u32 %s186, 1
          %s1079 = scalar_lea.sflag [#allocation4], %s1078
          %s1080 = sand.u32 %s186, 1
          %s1081 = smul.addr %s1080, 8
          %s1082 = scalar_lea.vmem [#allocation7], %s1081
          %1084 = dma.done %s1079, 128
        $region68: #{encoder_block.1} parent=63 // pred_fallthru
          _
      $region64: #{encoder_block.1} parent=5 // pred_fallthru
        _
    $region6: #{encoder_block.1} parent=1 // loop_footer
      %s24 = sadd.s32 1, %s20
    $region7: #{encoder_block.1} parent=1 // loop_footer_branch
      %19 = sbr.rel target = $region3
    $region8: #{encoder_block.1} parent=1 // loop_exit
      _
    %1085 = vsyncpa [#allocation3], 1
    %s1086 = scalar_lea.sflag [#allocation3], 1
    %1087 = vsyncpa %s1086, 1
    %1088 = vsyncpa [#allocation6], 1
    %1089 = vsyncpa [#allocation4], 1
    %s1090 = scalar_lea.sflag [#allocation4], 1
    %1091 = vsyncpa %s1090, 1

</llo_original>
